<compile_context>
chip_gen: v6e
topology: v6e:2x2x1
jax: 0.10.0
libtpu: 0.0.40
codegen_flags: <defaults>
</compile_context>

<pallas_src>
import jax
import jax.numpy as jnp
import numpy as np
from jax.experimental import pallas as pl
from jax.experimental.pallas import tpu as pltpu

# Standard CLIP BPE special tokens (vocab size 49408).
SOT_TOKEN = 49406
EOT_TOKEN = 49407
CONTEXT_LENGTH = 77
CTX_PAD = 128  # optional lane-dense output width (>= CONTEXT_LENGTH)


def _tokenize_kernel(tok_ref, out_ref):
    """tok_ref: (TB, W) int32 packed rows — lane 0 = SOT, lanes 1..L = raw BPE
    ids (ragged), lane W-1 = precomputed EOT position (= min(len+1, 76)).
    out_ref: (TB, C) int32 assembled [SOT, toks..., EOT, 0...] rows."""
    TB, W = tok_ref.shape
    _, C = out_ref.shape

    toks = tok_ref[...]                       # (TB, W) packed ids
    eot = toks[:, W - 1:W]                    # (TB, 1) EOT position per row

    # Only lanes < 77 (and < W) can ever hold a nonzero value, so compute in
    # the narrow lane domain K = min(W, C) and zero-fill the rest of the row.
    K = min(W, C)
    body_src = toks if K == W else toks[:, :K]
    pos = jax.lax.broadcasted_iota(jnp.int32, (TB, K), 1)

    # pos < eot  -> packed value (lane 0 already == SOT, lanes 1.. == raw ids)
    # pos == eot -> EOT (also covers the truncation overwrite at lane 76)
    # pos > eot  -> 0   (also hides the EOT-position lane and any ragged tail)
    body = jnp.where(
        pos < eot,
        body_src,
        jnp.where(pos == eot, jnp.int32(EOT_TOKEN), jnp.int32(0)),
    )

    if K == C:
        out_ref[...] = body
    else:
        out_ref[...] = jnp.zeros((TB, C), jnp.int32)
        out_ref[:, :K] = body


def _pick_block_rows(batch, block_rows):
    """Sublane-aligned batch tile: >=1024 rows/step to amortize the ~0.35us
    per-grid-step overhead (v5e/v6e), <= block_rows for VMEM (real usage is
    ~3.5 KiB/row incl. lane padding -> ~14 MiB at 4096), and >= ~8 grid steps
    for very large batches so v7x's two TensorCores each get several steps."""
    tb = max(1024, -(-batch // 8))            # cdiv(batch, 8) -> ~8 steps
    tb = ((tb + 7) // 8) * 8                  # sublane align
    tb = min(tb, block_rows)
    if tb >= batch:
        return batch                          # one block == full batch dim
    return max(8, (tb // 8) * 8)


def tokenize_pallas(token_ids, lengths, context_length=CONTEXT_LENGTH,
                    block_rows=4096, lane_dense_output=False):
    """token_ids: [B, L] int BPE ids (ragged; entries past each row's length
    are ignored); lengths: [B] number of valid raw tokens per row.
    Returns [B, context_length] int32 (PyTorch returns int64; values identical).
    If lane_dense_output=True, returns a [B, 128] zero-tailed buffer instead
    (use when the downstream embedding lookup can consume it directly, so the
    slice-to-77 fuses there and is never materialized)."""
    B, L = token_ids.shape
    out_w = CTX_PAD if lane_dense_output else context_length

    token_ids = token_ids.astype(jnp.int32)
    lens = jnp.minimum(lengths.astype(jnp.int32), L)
    # Precompute the EOT position (truncation folded in) so the kernel does no
    # per-row arithmetic, and pack [SOT | raw ids | eot_pos] into ONE buffer so
    # there is a single lane-padded input stream (no separate (tb,1) block).
    eot_pos = jnp.minimum(lens + 1, context_length - 1).reshape(B, 1)
    sot_col = jnp.full((B, 1), SOT_TOKEN, dtype=jnp.int32)
    packed = jnp.concatenate([sot_col, token_ids, eot_pos], axis=1)  # (B, L+2)
    W = L + 2

    tb = _pick_block_rows(B, block_rows)
    grid = (pl.cdiv(B, tb),)

    cost = pl.CostEstimate(
        flops=4 * B * min(W, out_w),                 # iota/compare/select chain
        transcendentals=0,
        bytes_accessed=(B * W + B * out_w) * 4,
    )

    out = pl.pallas_call(
        _tokenize_kernel,
        out_shape=jax.ShapeDtypeStruct((B, out_w), jnp.int32),
        grid=grid,
        in_specs=[pl.BlockSpec((tb, W), lambda i: (i, 0))],
        out_specs=pl.BlockSpec((tb, out_w), lambda i: (i, 0)),
        compiler_params=pltpu.CompilerParams(
            dimension_semantics=("parallel",),
            vmem_limit_bytes=32 * 1024 * 1024,
        ),
        cost_estimate=cost,
    )(packed)
    return out


if __name__ == "__main__":
    # TODO(synk): the BPE/regex string encoding step of clip.tokenize is
    # host-side string processing with no Pallas equivalent; we synthesize its
    # output (token ids + lengths) deterministically instead.
    key = jax.random.PRNGKey(0)

    def reference(tok_np, len_np, context_length=CONTEXT_LENGTH):
        b, l = tok_np.shape
        ref = np.zeros((b, context_length), dtype=np.int32)
        for i in range(b):
            n = int(min(len_np[i], l))
            row = [SOT_TOKEN] + list(tok_np[i, :n]) + [EOT_TOKEN]
            if len(row) > context_length:
                row = row[:context_length]
                row[-1] = EOT_TOKEN
            ref[i, :len(row)] = row
        return ref

    k1, k2, k3, k4 = jax.random.split(key, 4)

    # Test 1: small batch, short rows (no truncation), single grid step,
    # plus the lane-dense [B, 128] output variant.
    B1, L1 = 2, 16
    len1 = jax.random.randint(k1, (B1,), 3, L1 + 1, dtype=jnp.int32)
    tok1 = jax.random.randint(k2, (B1, L1), 1, 49000, dtype=jnp.int32)
    tok1 = jnp.where(jnp.arange(L1)[None, :] < len1[:, None], tok1, 0)

    out1 = jax.block_until_ready(tokenize_pallas(tok1, len1))
    ref1 = reference(np.asarray(tok1), np.asarray(len1))
    assert out1.shape == (B1, CONTEXT_LENGTH)
    assert np.array_equal(np.asarray(out1), ref1), "test1: kernel != reference"

    out1d = jax.block_until_ready(
        tokenize_pallas(tok1, len1, lane_dense_output=True))
    assert out1d.shape == (B1, CTX_PAD)
    assert np.array_equal(np.asarray(out1d)[:, :CONTEXT_LENGTH], ref1)
    assert np.all(np.asarray(out1d)[:, CONTEXT_LENGTH:] == 0)

    # Test 2: long rows (L >= 76) to exercise the truncation / EOT-overwrite
    # path, and B > tb (block_rows=8 -> 3 grid steps) to exercise the tiling.
    B2, L2 = 24, 90
    len2 = jax.random.randint(k3, (B2,), 3, L2 + 1, dtype=jnp.int32)
    len2 = len2.at[0].set(90).at[1].set(76).at[2].set(75)
    tok2 = jax.random.randint(k4, (B2, L2), 1, 49000, dtype=jnp.int32)
    tok2 = jnp.where(jnp.arange(L2)[None, :] < len2[:, None], tok2, 0)

    out2 = jax.block_until_ready(tokenize_pallas(tok2, len2, block_rows=8))
    ref2 = reference(np.asarray(tok2), np.asarray(len2))
    assert out2.shape == (B2, CONTEXT_LENGTH)
    assert np.array_equal(np.asarray(out2), ref2), "test2: kernel != reference"

    print("KERNEL_OK")
</pallas_src>

<mosaic_0001>
module attributes {stable_mosaic.version = 11 : i64} {
  func.func @_tokenize_kernel(%arg0: i32, %arg1: memref<2x18xi32, #tpu.memory_space<vmem>>, %arg2: memref<2x77xi32, #tpu.memory_space<vmem>>) attributes {dimension_semantics = [#tpu.dimension_semantics<parallel>], iteration_bounds = array<i64: 1>, scalar_prefetch = 0 : i64, scratch_operands = 0 : i64, tpu.core_type = #tpu.core_type<tc>, window_params = [{transform_indices = @transform_0, window_bounds = array<i64: 2, 18>}, {transform_indices = @transform_1, window_bounds = array<i64: 2, 77>}]} {
    %c0 = arith.constant 0 : index
    %c0_0 = arith.constant 0 : index
    %0 = vector.load %arg1[%c0, %c0_0] : memref<2x18xi32, #tpu.memory_space<vmem>>, vector<2x18xi32>
    %1 = vector.extract_strided_slice %0 {offsets = [0, 17], sizes = [2, 1], strides = [1, 1]} : vector<2x18xi32> to vector<2x1xi32>
    %2 = tpu.iota {dimensions = array<i32: 1>} : vector<2x18xi32>
    %3 = vector.broadcast %1 : vector<2x1xi32> to vector<2x18xi32>
    %4 = arith.cmpi slt, %2, %3 : vector<2x18xi32>
    %5 = vector.broadcast %1 : vector<2x1xi32> to vector<2x18xi32>
    %6 = arith.cmpi eq, %2, %5 : vector<2x18xi32>
    %c49407_i32 = arith.constant 49407 : i32
    %c0_i32 = arith.constant 0 : i32
    %7 = vector.broadcast %c49407_i32 : i32 to vector<2x18xi32>
    %8 = vector.broadcast %c0_i32 : i32 to vector<2x18xi32>
    %9 = arith.select %6, %7, %8 : vector<2x18xi1>, vector<2x18xi32>
    %10 = arith.select %4, %0, %9 : vector<2x18xi1>, vector<2x18xi32>
    %c0_i32_1 = arith.constant 0 : i32
    %11 = vector.broadcast %c0_i32_1 : i32 to vector<2x77xi32>
    %c0_2 = arith.constant 0 : index
    %c0_3 = arith.constant 0 : index
    %12 = vector.load %arg2[%c0_2, %c0_3] : memref<2x77xi32, #tpu.memory_space<vmem>>, vector<2x77xi32>
    tpu.vector_store %arg2[%c0_2, %c0_3], %11 {strides = array<i32>} : memref<2x77xi32, #tpu.memory_space<vmem>>, vector<2x77xi32>,
    %c0_4 = arith.constant 0 : index
    %c0_5 = arith.constant 0 : index
    %13 = vector.load %arg2[%c0_4, %c0_5] : memref<2x77xi32, #tpu.memory_space<vmem>>, vector<2x18xi32>
    tpu.vector_store %arg2[%c0_4, %c0_5], %10 {strides = array<i32>} : memref<2x77xi32, #tpu.memory_space<vmem>>, vector<2x18xi32>,
    return
  }
  func.func @transform_0(%arg0: i32) -> (i32, i32) {
    %c0_i32 = arith.constant 0 : i32
    %c0_i32_0 = arith.constant 0 : i32
    return %arg0, %c0_i32 : i32, i32
  }
  func.func @transform_1(%arg0: i32) -> (i32, i32) {
    %c0_i32 = arith.constant 0 : i32
    %c0_i32_0 = arith.constant 0 : i32
    return %arg0, %c0_i32 : i32, i32
  }
}

</mosaic_0001>

<llo_original>
// kernel: tpu_custom_call.1
$region0: #{tpu_custom_call.1}
  #allocation0 [shape = 'u32[]', space=smem, size = 0x4, offset = 0x4, fixed_abs, tag = 'smem constant byte address 0x4 - core index']
  #allocation1 [shape = 'u32[144,128]{1,0:T(1,128)}', space=vmem, size = 0x12000, scoped, tag = 'internal scratch']
  %s0 = inlined_call_operand.hbm [shape: s32[2,18], index: 0, kind: input, shape index: {}]
  %s1 = inlined_call_operand.hbm [shape: s32[2,77], index: 1, kind: output, shape index: {}]
  %s2 = sld [smem:[#allocation0]]
  $region18: #{tpu_custom_call.1} parent=0
    _
  %s4 = ssub.s32 1, %s2
  %s5 = scalar_select 0, %s4, %s2
  $region1: #{tpu_custom_call.1} parent=0
    #allocation2 [shape = 'u8[1024]{0}', space=vmem, size = 0x400, scoped, tag = 'input window, operand 0, single buffered']
    #allocation3 [shape = 's32[1]{0}', space=sflag, size = 0x4, scoped, tag = 'scoped memory for tpu_custom_call.1']
    #allocation4 [shape = 's32[1]{0}', space=sflag, size = 0x4, scoped, tag = 'scoped memory for tpu_custom_call.1']
    #allocation5 [shape = 'u8[1024]{0}', space=vmem, size = 0x400, scoped, tag = 'output window, operand 0, single buffered']
    %6 = vsyncpa [#allocation3], 0
    %7 = vsyncpa [#allocation4], 0
    // Predicated region
    $region2: #{tpu_custom_call.1} parent=1 // pred_check
      _
    $region3: #{tpu_custom_call.1} parent=1 // pred_check_branch
      %9 = sbr.rel (0) target = $region5
    $region4: #{tpu_custom_call.1} parent=1 // pred_region
      %s11 = ssub.s32 32, 32
      %12 = vsyncadd [#allocation3], %s11
      %s14 = sshll.u32 [#allocation2], 4
      %s15 = int_to_ptr.vmem [resolvable:$true] %s14
      %17 = dma.hbm_to_vmem [thread:$0]  %s0, 32, %s15, [#allocation3]
    $region5: #{tpu_custom_call.1} parent=1 // pred_fallthru
      _
    // Predicated region
    $region6: #{tpu_custom_call.1} parent=1 // pred_check
      _
    $region7: #{tpu_custom_call.1} parent=1 // pred_check_branch
      %19 = sbr.rel (0) target = $region9
    $region8: #{tpu_custom_call.1} parent=1 // pred_region
      %20 = dma.done [#allocation3], 32
    $region9: #{tpu_custom_call.1} parent=1 // pred_fallthru
      _
    %v21 = vld [vmem:[#allocation2] sm:$0x3]
    %v22 = vlaneseq
    %v23 = vand.u32 %v22, 127
    %24 = vset.pattern.permute.xlu0 17
    %25 = vperm.xlu0 %24, %v21
    %v26 = vpop.permute.xlu0 %25
    %vm27 = vcmp.lt.s32.totalorder %v23, %v26
    %vm28 = vcmp.eq.s32.totalorder %v23, %v26
    %v29 = vsel %vm28, 49407, 0
    %v30 = vsel %vm27, %v21, %v29
    %vm31 = vcmask 623616
    %32 = vst.msk [vmem:[#allocation5] sm:$0x3] %vm31, 0
    %vm33 = vcmask 140288
    %34 = vst.msk [vmem:[#allocation5] sm:$0x3] %vm33, %v30
    // Predicated region
    $region10: #{tpu_custom_call.1} parent=1 // pred_check
      _
    $region11: #{tpu_custom_call.1} parent=1 // pred_check_branch
      %36 = sbr.rel (0) target = $region13
    $region12: #{tpu_custom_call.1} parent=1 // pred_region
      %s38 = ssub.s32 32, 32
      %39 = vsyncadd [#allocation4], %s38
      %s41 = sshll.u32 [#allocation5], 4
      %s42 = int_to_ptr.vmem [resolvable:$true] %s41
      %44 = dma.vmem_to_hbm [thread:$0]  %s42, 32, %s1, [#allocation4]
    $region13: #{tpu_custom_call.1} parent=1 // pred_fallthru
      _
    // Predicated region
    $region14: #{tpu_custom_call.1} parent=1 // pred_check
      _
    $region15: #{tpu_custom_call.1} parent=1 // pred_check_branch
      %46 = sbr.rel (0) target = $region17
    $region16: #{tpu_custom_call.1} parent=1 // pred_region
      %47 = dma.done [#allocation4], 32
    $region17: #{tpu_custom_call.1} parent=1 // pred_fallthru
      _
    %48 = vsyncpa [#allocation3], 1
    %49 = vsyncpa [#allocation4], 1

</llo_original>
